<compile_context>
chip_gen: v7x
topology: tpu7x:2x2x1
jax: 0.10.0
libtpu: 0.0.40
codegen_flags: <defaults>
</compile_context>

<pallas_src>
import functools
import math

import jax
import jax.numpy as jnp
from jax import lax
from jax.experimental import pallas as pl
from jax.experimental.pallas import tpu as pltpu


def _angular_loss_block_kernel(pred_ref, labels_ref, out_ref, *,
                               loss_type, s, m, eps, n_rows, tile_n):
    i = pl.program_id(0)
    pred = pred_ref[...].astype(jnp.float32)          # (tile_n, C)
    labels = labels_ref[...]                          # (tile_n, 1) int32
    tn, c = pred.shape

    # one-hot selection of the target logit per row (gather via mask + reduce)
    col_ids = lax.broadcasted_iota(jnp.int32, (tn, c), 1)
    onehot = (col_ids == labels)                      # (tile_n, C) bool
    target = jnp.sum(jnp.where(onehot, pred, 0.0), axis=1, keepdims=True)  # (tile_n, 1)

    if loss_type == 'cosface':
        numerator = s * (target - m)
    elif loss_type == 'arcface':
        t = jnp.clip(target, -1.0 + eps, 1.0 - eps)
        # cos(acos(t) + m) = t*cos(m) - sqrt(1 - t^2)*sin(m); cos(m)/sin(m) are constants.
        numerator = s * (t * math.cos(m) - jnp.sqrt(1.0 - t * t) * math.sin(m))
    elif loss_type == 'sphereface':
        # TODO(synk): cos(m*acos(t)) for non-integer m needs acos; jnp.arccos
        # lowering through Mosaic is not guaranteed, so sphereface is untested.
        t = jnp.clip(target, -1.0 + eps, 1.0 - eps)
        numerator = s * jnp.cos(m * jnp.arccos(t))
    else:
        raise ValueError(loss_type)

    # Single exp per (row, class) element; excluded-class sum via subtraction of
    # the target term (identical to masking+reducing exp_all a second time).
    exp_all = jnp.exp(s * pred)                                   # (tile_n, C)
    sum_all = jnp.sum(exp_all, axis=1, keepdims=True)             # (tile_n, 1)
    sum_excl = sum_all - jnp.exp(s * target)                      # (tile_n, 1)

    denominator = jnp.exp(numerator) + sum_excl                   # (tile_n, 1)
    L = numerator - jnp.log(denominator)                          # (tile_n, 1)

    # Mask rows that fall past N (padded tail block).
    row_ids = i * tile_n + lax.broadcasted_iota(jnp.int32, (tn, 1), 0)
    L = jnp.where(row_ids < n_rows, L, 0.0)

    # Per-block partial sum; the -mean is finished in the wrapper.
    out_ref[...] = jnp.sum(L).reshape(1, 1, 1)


def _pick_tile_n(n, c, itemsize, block_rows):
    if block_rows is not None:
        tile = max(8, (int(block_rows) // 8) * 8)
    else:
        # Target ~2 MiB pred blocks (double-buffered they stay well under the
        # default scoped VMEM limit on v5e/v6e/v7x); full class axis per block.
        bytes_per_row = max(c * itemsize, 1)
        tile = max(8, min(1024, ((2 << 20) // bytes_per_row) // 8 * 8))
    if n <= tile:
        return n          # single block covering all rows (full-dim block is legal)
    return tile


def angular_penalty_sm_loss(pred, labels, *, loss_type='arcface',
                            eps=1e-7, s=None, m=None, block_rows=None):
    loss_type = loss_type.lower()
    assert loss_type in ('arcface', 'sphereface', 'cosface')
    # Use `is None` (an explicit s=0/m=0 would otherwise be treated as unset).
    if s is None:
        s = 64.0 if loss_type in ('arcface', 'sphereface') else 30.0
    if m is None:
        m = {'arcface': 0.5, 'sphereface': 1.35, 'cosface': 0.4}[loss_type]

    n, c = pred.shape
    if not jnp.issubdtype(pred.dtype, jnp.floating):
        pred = pred.astype(jnp.float32)   # keep bf16/f16 inputs in native dtype
    labels2d = labels.astype(jnp.int32).reshape(-1, 1)

    tile_n = _pick_tile_n(n, c, jnp.dtype(pred.dtype).itemsize, block_rows)
    grid = pl.cdiv(n, tile_n)

    # TODO(synk): very large class counts (C blocks that no longer fit VMEM)
    # would additionally need a trailing "arbitrary" C-grid axis with running
    # sum/target accumulators in scratch; not needed for these shapes.
    kernel = functools.partial(
        _angular_loss_block_kernel, loss_type=loss_type,
        s=float(s), m=float(m), eps=float(eps), n_rows=n, tile_n=tile_n)

    partials = pl.pallas_call(
        kernel,
        out_shape=jax.ShapeDtypeStruct((grid, 1, 1), jnp.float32),
        grid=(grid,),
        in_specs=[
            pl.BlockSpec((tile_n, c), lambda i: (i, 0)),
            pl.BlockSpec((tile_n, 1), lambda i: (i, 0)),
        ],
        out_specs=pl.BlockSpec((1, 1, 1), lambda i: (i, 0, 0)),
        compiler_params=pltpu.CompilerParams(
            dimension_semantics=("parallel",)),
    )(pred, labels2d)

    return -jnp.sum(partials) / n


def _ref_loss(pred, labels, loss_type, s, m, eps=1e-7):
    """Pure-JAX reference (same math as the PyTorch forward)."""
    n = pred.shape[0]
    pred = pred.astype(jnp.float32)
    tgt = pred[jnp.arange(n), labels]
    if loss_type == 'arcface':
        num = s * jnp.cos(jnp.arccos(jnp.clip(tgt, -1.0 + eps, 1.0 - eps)) + m)
    elif loss_type == 'cosface':
        num = s * (tgt - m)
    else:
        num = s * jnp.cos(m * jnp.arccos(jnp.clip(tgt, -1.0 + eps, 1.0 - eps)))
    exp_all = jnp.exp(s * pred)
    sum_excl = jnp.sum(exp_all, axis=1) - exp_all[jnp.arange(n), labels]
    return -jnp.mean(num - jnp.log(jnp.exp(num) + sum_excl))


if __name__ == "__main__":
    key = jax.random.PRNGKey(0)
    k1, k2, k3, k4 = jax.random.split(key, 4)

    # 1) small arcface problem, single row block
    N, C = 8, 16
    pred = jax.random.uniform(k1, (N, C), jnp.float32, minval=-1.0, maxval=1.0)
    labels = jax.random.randint(k2, (N,), 0, C, dtype=jnp.int32)

    loss = angular_penalty_sm_loss(pred, labels, loss_type='arcface')
    jax.block_until_ready(loss)
    ref = _ref_loss(pred, labels, 'arcface', 64.0, 0.5)
    assert jnp.allclose(loss, ref, rtol=1e-4, atol=1e-4), (loss, ref)

    # 2) cosface branch
    loss_cf = angular_penalty_sm_loss(pred, labels, loss_type='cosface')
    jax.block_until_ready(loss_cf)
    ref_cf = _ref_loss(pred, labels, 'cosface', 30.0, 0.4)
    assert jnp.allclose(loss_cf, ref_cf, rtol=1e-4, atol=1e-4), (loss_cf, ref_cf)

    # 3) multi-block grid with a masked (partially out-of-bounds) tail block
    N2, C2 = 20, 16
    pred2 = jax.random.uniform(k3, (N2, C2), jnp.float32, minval=-1.0, maxval=1.0)
    labels2 = jax.random.randint(k4, (N2,), 0, C2, dtype=jnp.int32)
    loss2 = angular_penalty_sm_loss(pred2, labels2, loss_type='arcface',
                                    block_rows=8)   # grid=3, last block 4 valid rows
    jax.block_until_ready(loss2)
    ref2 = _ref_loss(pred2, labels2, 'arcface', 64.0, 0.5)
    assert jnp.allclose(loss2, ref2, rtol=1e-4, atol=1e-4), (loss2, ref2)

    print("KERNEL_OK")
</pallas_src>

<mosaic_0001>
module attributes {stable_mosaic.version = 11 : i64} {
  func.func @_angular_loss_block_kernel(%arg0: i32, %arg1: memref<8x16xf32, #tpu.memory_space<vmem>>, %arg2: memref<8x1xi32, #tpu.memory_space<vmem>>, %arg3: memref<1x1x1xf32, #tpu.memory_space<vmem>>) attributes {dimension_semantics = [#tpu.dimension_semantics<parallel>], iteration_bounds = array<i64: 1>, scalar_prefetch = 0 : i64, scratch_operands = 0 : i64, tpu.core_type = #tpu.core_type<tc>, window_params = [{transform_indices = @transform_0, window_bounds = array<i64: 8, 16>}, {transform_indices = @transform_1, window_bounds = array<i64: 8, 1>}, {transform_indices = @transform_2, window_bounds = array<i64: 1, 1, 1>}]} {
    %c0 = arith.constant 0 : index
    %c0_0 = arith.constant 0 : index
    %0 = vector.load %arg1[%c0, %c0_0] : memref<8x16xf32, #tpu.memory_space<vmem>>, vector<8x16xf32>
    %c0_1 = arith.constant 0 : index
    %c0_2 = arith.constant 0 : index
    %1 = vector.load %arg2[%c0_1, %c0_2] : memref<8x1xi32, #tpu.memory_space<vmem>>, vector<8x1xi32>
    %2 = tpu.iota {dimensions = array<i32: 1>} : vector<8x16xi32>
    %3 = vector.broadcast %1 : vector<8x1xi32> to vector<8x16xi32>
    %4 = arith.cmpi eq, %2, %3 : vector<8x16xi32>
    %cst = arith.constant 0.000000e+00 : f32
    %5 = vector.broadcast %cst : f32 to vector<8x16xf32>
    %6 = arith.select %4, %0, %5 : vector<8x16xi1>, vector<8x16xf32>
    %cst_3 = arith.constant dense<0.000000e+00> : vector<8xf32>
    %7 = vector.multi_reduction <add>, %6, %cst_3 [1] : vector<8x16xf32> to vector<8xf32>
    %8 = vector.shape_cast %7 : vector<8xf32> to vector<8x1xf32>
    %cst_4 = arith.constant -0.99999988 : f32
    %cst_5 = arith.constant 0.99999988 : f32
    %9 = vector.broadcast %cst_4 : f32 to vector<8x1xf32>
    %10 = arith.maximumf %9, %8 : vector<8x1xf32>
    %11 = vector.broadcast %cst_5 : f32 to vector<8x1xf32>
    %12 = arith.minimumf %11, %10 : vector<8x1xf32>
    %cst_6 = arith.constant 0.87758255 : f32
    %13 = vector.broadcast %cst_6 : f32 to vector<8x1xf32>
    %14 = arith.mulf %12, %13 : vector<8x1xf32>
    %15 = arith.mulf %12, %12 : vector<8x1xf32>
    %cst_7 = arith.constant 1.000000e+00 : f32
    %16 = vector.broadcast %cst_7 : f32 to vector<8x1xf32>
    %17 = arith.subf %16, %15 : vector<8x1xf32>
    %18 = math.sqrt %17 : vector<8x1xf32>
    %cst_8 = arith.constant 0.47942555 : f32
    %19 = vector.broadcast %cst_8 : f32 to vector<8x1xf32>
    %20 = arith.mulf %18, %19 : vector<8x1xf32>
    %21 = arith.subf %14, %20 : vector<8x1xf32>
    %cst_9 = arith.constant 6.400000e+01 : f32
    %22 = vector.broadcast %cst_9 : f32 to vector<8x1xf32>
    %23 = arith.mulf %22, %21 : vector<8x1xf32>
    %cst_10 = arith.constant 6.400000e+01 : f32
    %24 = vector.broadcast %cst_10 : f32 to vector<8x16xf32>
    %25 = arith.mulf %24, %0 : vector<8x16xf32>
    %26 = math.exp %25 : vector<8x16xf32>
    %cst_11 = arith.constant dense<0.000000e+00> : vector<8xf32>
    %27 = vector.multi_reduction <add>, %26, %cst_11 [1] : vector<8x16xf32> to vector<8xf32>
    %28 = vector.shape_cast %27 : vector<8xf32> to vector<8x1xf32>
    %cst_12 = arith.constant 6.400000e+01 : f32
    %29 = vector.broadcast %cst_12 : f32 to vector<8x1xf32>
    %30 = arith.mulf %29, %8 : vector<8x1xf32>
    %31 = math.exp %30 : vector<8x1xf32>
    %32 = arith.subf %28, %31 : vector<8x1xf32>
    %33 = math.exp %23 : vector<8x1xf32>
    %34 = arith.addf %33, %32 : vector<8x1xf32>
    %35 = math.log %34 : vector<8x1xf32>
    %36 = arith.subf %23, %35 : vector<8x1xf32>
    %c8_i32 = arith.constant 8 : i32
    %37 = arith.muli %arg0, %c8_i32 : i32
    %38 = tpu.iota {dimensions = array<i32: 0>} : vector<8x1xi32>
    %39 = vector.broadcast %37 : i32 to vector<8x1xi32>
    %40 = arith.addi %39, %38 : vector<8x1xi32>
    %c8_i32_13 = arith.constant 8 : i32
    %41 = vector.broadcast %c8_i32_13 : i32 to vector<8x1xi32>
    %42 = arith.cmpi slt, %40, %41 : vector<8x1xi32>
    %cst_14 = arith.constant 0.000000e+00 : f32
    %43 = vector.broadcast %cst_14 : f32 to vector<8x1xf32>
    %44 = arith.select %42, %36, %43 : vector<8x1xi1>, vector<8x1xf32>
    %45 = vector.shape_cast %44 : vector<8x1xf32> to vector<1x8x1xf32>
    %cst_15 = arith.constant dense<0.000000e+00> : vector<1xf32>
    %46 = vector.multi_reduction <add>, %45, %cst_15 [1, 2] : vector<1x8x1xf32> to vector<1xf32>
    %47 = vector.shape_cast %46 : vector<1xf32> to vector<1x1x1xf32>
    %48 = vector.extract %47[0, 0, 0] : f32 from vector<1x1x1xf32>
    %49 = vector.broadcast %48 : f32 to vector<1x1x1xf32>
    %c0_16 = arith.constant 0 : index
    %c0_17 = arith.constant 0 : index
    %c0_18 = arith.constant 0 : index
    %50 = vector.load %arg3[%c0_16, %c0_17, %c0_18] : memref<1x1x1xf32, #tpu.memory_space<vmem>>, vector<1x1x1xf32>
    tpu.vector_store %arg3[%c0_16, %c0_17, %c0_18], %49 {strides = array<i32>} : memref<1x1x1xf32, #tpu.memory_space<vmem>>, vector<1x1x1xf32>,
    return
  }
  func.func @transform_0(%arg0: i32) -> (i32, i32) {
    %c0_i32 = arith.constant 0 : i32
    %c0_i32_0 = arith.constant 0 : i32
    return %arg0, %c0_i32 : i32, i32
  }
  func.func @transform_1(%arg0: i32) -> (i32, i32) {
    %c0_i32 = arith.constant 0 : i32
    %c0_i32_0 = arith.constant 0 : i32
    return %arg0, %c0_i32 : i32, i32
  }
  func.func @transform_2(%arg0: i32) -> (i32, i32, i32) {
    %c0_i32 = arith.constant 0 : i32
    %c0_i32_0 = arith.constant 0 : i32
    %c0_i32_1 = arith.constant 0 : i32
    return %arg0, %c0_i32, %c0_i32_0 : i32, i32, i32
  }
}

</mosaic_0001>

<llo_original>
// kernel: tpu_custom_call.1
$region0: #{tpu_custom_call.1}
  #allocation0 [shape = 'u32[]', space=smem, size = 0x4, offset = 0x4, fixed_abs, tag = 'smem constant byte address 0x4 - core index']
  #allocation1 [shape = 'u32[144,128]{1,0:T(1,128)}', space=vmem, size = 0x12000, scoped, tag = 'internal scratch']
  %s0 = inlined_call_operand.vmem [shape: f32[8,16], index: 0, kind: input, shape index: {}]
  %s1 = inlined_call_operand.vmem [shape: s32[8,1], index: 1, kind: input, shape index: {}]
  %s2 = inlined_call_operand.hbm [shape: f32[1,1,1], index: 2, kind: output, shape index: {}]
  %s3 = sld [smem:[#allocation0]]
  $region18: #{tpu_custom_call.1} parent=0
    _
  %s5 = ssub.s32 1, %s3
  %s6 = scalar_select 0, %s5, %s3
  $region1: #{tpu_custom_call.1} parent=0
    #allocation2 [shape = 'u8[512]{0}', space=vmem, size = 0x400, scoped, tag = 'output window, operand 0, single buffered']
    #allocation3 [shape = 's32[1]{0}', space=sflag, size = 0x4, scoped, tag = 'scoped memory for tpu_custom_call.1']
    %7 = vsyncpa [#allocation3], 0
    // Predicated region
    $region2: #{tpu_custom_call.1} parent=1 // pred_check
      _
    $region3: #{tpu_custom_call.1} parent=1 // pred_check_branch
      %9 = sbr.rel (0) target = $region5
    $region4: #{tpu_custom_call.1} parent=1 // pred_region
      _
    $region5: #{tpu_custom_call.1} parent=1 // pred_fallthru
      _
    // Predicated region
    $region6: #{tpu_custom_call.1} parent=1 // pred_check
      _
    $region7: #{tpu_custom_call.1} parent=1 // pred_check_branch
      %11 = sbr.rel (0) target = $region9
    $region8: #{tpu_custom_call.1} parent=1 // pred_region
      _
    $region9: #{tpu_custom_call.1} parent=1 // pred_fallthru
      _
    %v12 = vld [vmem:[%s0] sm:$0xff]
    %v13 = vld [vmem:[%s1] sm:$0xff]
    %v14 = vlaneseq
    %v15 = vand.u32 %v14, 127
    %16 = vset.pattern.permute.xlu0 0
    %17 = vperm.xlu0 %16, %v13
    %v18 = vpop.permute.xlu0 %17
    %vm19 = vcmp.eq.s32.totalorder %v15, %v18
    %v20 = vsel %vm19, %v12, 0.0
    %vm21 = vcmask 130048
    %v22 = vsel %vm21, %v20, 0.0
    %23 = vadd.xlane.f32.xlu0 %v22
    %v24 = vpop.xlane.xlu0 %23
    %v25 = vmax.f32 %v24, -0.9999999
    %v26 = vmin.f32 %v25, 0.9999999
    %v27 = vmul.f32 %v26, 0.87758255
    %v28 = vmul.f32 %v26, %v26
    %v29 = vsub.f32 1.0, %v28
    %v30 = vrsqrt.pop %v29
    %v31 = vmul.f32 %v29, %v30
    %vm32 = vcmp.eq.f32.partialorder %v29, inf
    %v33 = vsel %vm32, %v29, %v31
    %vm34 = vcmp.eq.f32.partialorder %v29, 0.0
    %v35 = vand.u32 %v29, 2147483648
    %v36 = vsel %vm34, %v35, %v33
    %v37 = vmul.f32 %v36, 0.47942555
    %v38 = vsub.f32 %v27, %v37
    %v39 = vmul.f32 %v38, 64.0
    %v40 = vmul.f32 %v12, 64.0
    %v41 = vmul.f32 %v40, 1.442695
    %v42 = vpow.pop %v41
    %v43 = vsel %vm21, %v42, 0.0
    %44 = vadd.xlane.f32.xlu0 %v43
    %v45 = vpop.xlane.xlu0 %44
    %v46 = vmul.f32 %v24, 64.0
    %v47 = vmul.f32 %v46, 1.442695
    %v48 = vpow.pop %v47
    %v49 = vsub.f32 %v45, %v48
    %v50 = vmul.f32 %v39, 1.442695
    %v51 = vpow.pop %v50
    %v52 = vadd.f32 %v51, %v49
    %v53 = vlog2.pop %v52
    %v54 = vmul.f32 %v53, 0.6931472
    %v55 = vsub.f32 %v39, %v54
    %s56 = smul.u32 0, 8
    %v57 = vlaneseq
    %v58 = vshrl.u32 %v57, 7
    %v59 = vstv %s56
    %v60 = vadd.s32 %v59, %v58
    %vm61 = vcmp.lt.s32.totalorder %v60, 8
    %v62 = vsel %vm61, %v55, 0.0
    %vm63 = vcmask 7168
    %v64 = vsel %vm63, %v62, 0.0
    %65 = vadd.xlane.f32.xlu0 %v64
    %v66 = vpop.xlane.xlu0 %65
    %v67 = vrot.slane %v66, 4
    %v68 = vadd.f32 %v66, %v67
    %v69 = vrot.slane %v68, 2
    %v70 = vadd.f32 %v68, %v69
    %v71 = vrot.slane %v70, 1
    %v72 = vadd.f32 %v70, %v71
    %s73 = vtos %v72
    %v74 = vstv %s73
    %vm75 = vcmask 0
    %76 = vst.msk [vmem:[#allocation2] sm:$0x1] %vm75, %v74
    // Predicated region
    $region10: #{tpu_custom_call.1} parent=1 // pred_check
      _
    $region11: #{tpu_custom_call.1} parent=1 // pred_check_branch
      %78 = sbr.rel (0) target = $region13
    $region12: #{tpu_custom_call.1} parent=1 // pred_region
      %s80 = ssub.s32 16, 16
      %81 = vsyncadd [#allocation3], %s80
      %s83 = sshll.u32 [#allocation2], 4
      %s84 = int_to_ptr.vmem [resolvable:$true] %s83
      %86 = dma.vmem_to_hbm [thread:$0]  %s84, 16, %s2, [#allocation3]
    $region13: #{tpu_custom_call.1} parent=1 // pred_fallthru
      _
    // Predicated region
    $region14: #{tpu_custom_call.1} parent=1 // pred_check
      _
    $region15: #{tpu_custom_call.1} parent=1 // pred_check_branch
      %88 = sbr.rel (0) target = $region17
    $region16: #{tpu_custom_call.1} parent=1 // pred_region
      %89 = dma.done [#allocation3], 16
    $region17: #{tpu_custom_call.1} parent=1 // pred_fallthru
      _
    %90 = vsyncpa [#allocation3], 1

</llo_original>
